<compile_context>
chip_gen: v7x
topology: tpu7x:2x2x1
jax: 0.10.0
libtpu: 0.0.40
codegen_flags: <defaults>
</compile_context>

<pallas_src>
import functools
import math

import jax
import jax.numpy as jnp
import numpy as np
from jax.experimental import pallas as pl
from jax.experimental.pallas import tpu as pltpu

NEG_SLOPE = 0.01   # F.leaky_relu default
EPS = 1e-6         # instance_norm_layer epsilon

# Robust across Pallas versions (newer: CompilerParams, older: TPUCompilerParams).
_CompilerParams = getattr(pltpu, "CompilerParams", None) or getattr(pltpu, "TPUCompilerParams")


def _leaky_relu(x):
    return jnp.where(x > 0, x, NEG_SLOPE * x)


# --------------------- Fused conv + shuffle-norm + GLU kernel ---------------------
def _fused_upsample_kernel(x_ref, w_ref, b_ref, g2_ref, o_ref, xp_ref, slab_ref, *,
                           K, C, W, p, W_out, F, Nb):
    """x_ref:  (Nb, C, W)        unpadded input rows for this batch chunk
       w_ref:  (2F, K*C)          both conv branches stacked, col layout k*C + c
       b_ref:  (2F, 1)            both biases
       g2_ref: (2F, 2F)           block-diag group-average matrix (pixel-shuffle groups)
       o_ref:  (Nb, F, W_out)     output in un-shuffled layout (row-major == shuffled)
       xp_ref: (Nb, C, W + 2p)    VMEM scratch: zero-padded input (halo built on-chip)
       slab_ref: (K*C, Nb*W_out)  VMEM scratch: im2col slab for ONE fused MXU matmul"""
    w_all = w_ref[...]
    b_all = b_ref[...]
    G2 = g2_ref[...]

    # Halo / "same" padding built in VMEM (no host-side jnp.pad HBM round-trip).
    if p > 0:
        xp_ref[...] = jnp.zeros_like(xp_ref)
        xp_ref[:, :, p:p + W] = x_ref[...]
    else:
        xp_ref[...] = x_ref[...]

    # im2col: stack the K shifted views for every batch row once -> ONE matmul.
    for n in range(Nb):            # static unroll; Nb is kept small
        for k in range(K):
            slab_ref[k * C:(k + 1) * C, n * W_out:(n + 1) * W_out] = \
                xp_ref[n, :, k:k + W_out]

    # Both conv branches + bias + leaky_relu for the whole chunk in one MXU matmul.
    res = jnp.dot(w_all, slab_ref[...], preferred_element_type=jnp.float32) + b_all
    res = _leaky_relu(res)                                     # (2F, Nb*W_out)

    # Per-batch-row epilogue: instance-norm over each pixel-shuffle group (r consecutive
    # rows share stats == one row of the shuffled tensor), leaky_relu, sigmoid GLU.
    for n in range(Nb):
        v = res[:, n * W_out:(n + 1) * W_out]                  # (2F, W_out)
        gm = jnp.dot(G2, v, preferred_element_type=jnp.float32)
        mean = jnp.mean(gm, axis=-1, keepdims=True)            # (2F, 1) per-group mean
        cen = v - mean
        gv = jnp.dot(G2, cen * cen, preferred_element_type=jnp.float32)
        var = jnp.mean(gv, axis=-1, keepdims=True)             # (2F, 1) biased group var
        nrm = _leaky_relu(cen * jax.lax.rsqrt(var + EPS))      # norm + activation
        # GLU: main * sigmoid(gates)   (exp runs on the EUP)
        o_ref[n] = nrm[:F, :] * (1.0 / (1.0 + jnp.exp(-nrm[F:, :])))


# ----------------------------------- Wrapper --------------------------------------
def upsample1d_block(x, w1, b1, w2, b2, *, kernel_size, shuffle_size=2):
    """x: (N, C, W) f32.  w*: (K, F, C) (PyTorch Conv1d weight (F, C, K) transposed).
    b*: (F, 1).  Returns (N, F // shuffle_size, W_out * shuffle_size).  stride == 1."""
    N, C, W = x.shape
    K = kernel_size
    F_out = w1.shape[1]
    r = shuffle_size
    p = (K - 1) // 2                          # module's 'same' padding convention
    Wp = W + 2 * p
    W_out = Wp - K + 1

    # Fold both branches into one operand; flatten taps to match the im2col row layout.
    def flatten(w_kfc):                       # (K, F, C) -> (F, K*C), col = k*C + c
        return jnp.transpose(w_kfc, (1, 0, 2)).reshape(F_out, K * C)

    w_all = jnp.concatenate([flatten(w1), flatten(w2)], axis=0)     # (2F, K*C)
    b_all = jnp.concatenate([b1, b2], axis=0)                       # (2F, 1)

    # Block-diagonal (2F, 2F) group-average matrix: rows belonging to the same
    # pixel-shuffle output channel (r consecutive conv channels) average together.
    grp = np.arange(F_out) // r
    grp2 = np.concatenate([grp, grp + F_out // r])                  # keep branches apart
    G2 = jnp.asarray((grp2[:, None] == grp2[None, :]).astype(np.float32) / r)

    # Batch chunking: pack up to 8 rows per grid step (amortize ~0.35us/step overhead),
    # but keep >=2 grid steps when possible so the "parallel" axis can use both v7x TCs.
    # Per-step VMEM is tiny here; for large W re-derive Nb against v7x's 64 MiB VMEM.
    Nb = math.gcd(N, 8)
    if N > 1 and N // Nb < 2:
        Nb = max(1, Nb // 2)

    fused = pl.pallas_call(
        functools.partial(_fused_upsample_kernel, K=K, C=C, W=W, p=p,
                          W_out=W_out, F=F_out, Nb=Nb),
        out_shape=jax.ShapeDtypeStruct((N, F_out, W_out), jnp.float32),
        grid=(N // Nb,),
        in_specs=[
            pl.BlockSpec((Nb, C, W), lambda i: (i, 0, 0)),
            pl.BlockSpec((2 * F_out, K * C), lambda i: (0, 0)),
            pl.BlockSpec((2 * F_out, 1), lambda i: (0, 0)),
            pl.BlockSpec((2 * F_out, 2 * F_out), lambda i: (0, 0)),
        ],
        out_specs=pl.BlockSpec((Nb, F_out, W_out), lambda i: (i, 0, 0)),
        scratch_shapes=[
            pltpu.VMEM((Nb, C, Wp), jnp.float32),            # padded input (halo)
            pltpu.VMEM((K * C, Nb * W_out), jnp.float32),    # im2col slab
        ],
        compiler_params=_CompilerParams(
            dimension_semantics=("parallel",),               # shard batch chunks on v7x's 2 TCs
            vmem_limit_bytes=32 * 1024 * 1024),              # safe on v5e/v6e (128 MiB) & v7x (64 MiB)
    )
    y = fused(x, w_all, b_all, G2)                           # (N, F, W_out)

    # The module's pixel shuffle IS a row-major reshape -> free metadata reshape here.
    return y.reshape(N, F_out // r, W_out * r)


# ------------------------------- Pure-JAX reference --------------------------------
def _reference(x, w1_kfc, b1, w2_kfc, b2, *, kernel_size, shuffle_size=2):
    p = (kernel_size - 1) // 2

    def conv_branch(w_kfc, b):
        w_oik = jnp.transpose(w_kfc, (1, 2, 0))              # (F, C, K) like PyTorch
        y = jax.lax.conv_general_dilated(
            x, w_oik, window_strides=(1,), padding=[(p, p)],
            dimension_numbers=('NCH', 'OIH', 'NCH'))
        y = y + b.reshape(1, -1, 1)
        y = jnp.where(y > 0, y, NEG_SLOPE * y)
        N, F, W = y.shape
        y = y.reshape(N, F // shuffle_size, W * shuffle_size)
        mean = jnp.mean(y, axis=-1, keepdims=True)
        var = jnp.mean((y - mean) ** 2, axis=-1, keepdims=True)
        y = (y - mean) / jnp.sqrt(var + EPS)
        return jnp.where(y > 0, y, NEG_SLOPE * y)

    a = conv_branch(w1_kfc, b1)
    g = conv_branch(w2_kfc, b2)
    return a * jax.nn.sigmoid(g)


if __name__ == "__main__":
    # upsample1d_block(in_channels=4, filters=8, kernel_size=5, strides=1, shuffle_size=2)
    N, C_in, W = 2, 4, 16
    F_out, K, SHUF = 8, 5, 2

    key = jax.random.PRNGKey(0)
    kx, kw1, kb1, kw2, kb2 = jax.random.split(key, 5)
    x = jax.random.normal(kx, (N, C_in, W), jnp.float32)
    w1 = jax.random.normal(kw1, (K, F_out, C_in), jnp.float32) * 0.2
    b1 = jax.random.normal(kb1, (F_out, 1), jnp.float32) * 0.1
    w2 = jax.random.normal(kw2, (K, F_out, C_in), jnp.float32) * 0.2
    b2 = jax.random.normal(kb2, (F_out, 1), jnp.float32) * 0.1

    out = upsample1d_block(x, w1, b1, w2, b2, kernel_size=K, shuffle_size=SHUF)
    out = jax.block_until_ready(out)

    ref = _reference(x, w1, b1, w2, b2, kernel_size=K, shuffle_size=SHUF)
    assert out.shape == (N, F_out // SHUF, W * SHUF), out.shape
    np.testing.assert_allclose(np.asarray(out), np.asarray(ref), atol=1e-3, rtol=1e-3)

    print("KERNEL_OK")
</pallas_src>

<mosaic_0001>
module attributes {stable_mosaic.version = 11 : i64} {
  func.func @_fused_upsample_kernel(%arg0: i32, %arg1: memref<1x4x16xf32, #tpu.memory_space<vmem>>, %arg2: memref<16x20xf32, #tpu.memory_space<vmem>>, %arg3: memref<16x1xf32, #tpu.memory_space<vmem>>, %arg4: memref<16x16xf32, #tpu.memory_space<vmem>>, %arg5: memref<1x8x16xf32, #tpu.memory_space<vmem>>, %arg6: memref<1x4x20xf32, #tpu.memory_space<vmem>>, %arg7: memref<20x16xf32, #tpu.memory_space<vmem>>) attributes {dimension_semantics = [#tpu.dimension_semantics<parallel>], iteration_bounds = array<i64: 2>, scalar_prefetch = 0 : i64, scratch_operands = 2 : i64, tpu.core_type = #tpu.core_type<tc>, window_params = [{transform_indices = @transform_0, window_bounds = array<i64: 1, 4, 16>}, {pipeline_mode = #tpu.pipeline_mode<synchronous>, transform_indices = @transform_1, window_bounds = array<i64: 16, 20>}, {pipeline_mode = #tpu.pipeline_mode<synchronous>, transform_indices = @transform_2, window_bounds = array<i64: 16, 1>}, {pipeline_mode = #tpu.pipeline_mode<synchronous>, transform_indices = @transform_3, window_bounds = array<i64: 16, 16>}, {transform_indices = @transform_4, window_bounds = array<i64: 1, 8, 16>}]} {
    %c0 = arith.constant 0 : index
    %c0_0 = arith.constant 0 : index
    %0 = vector.load %arg2[%c0, %c0_0] : memref<16x20xf32, #tpu.memory_space<vmem>>, vector<16x20xf32>
    %c0_1 = arith.constant 0 : index
    %c0_2 = arith.constant 0 : index
    %1 = vector.load %arg3[%c0_1, %c0_2] : memref<16x1xf32, #tpu.memory_space<vmem>>, vector<16x1xf32>
    %c0_3 = arith.constant 0 : index
    %c0_4 = arith.constant 0 : index
    %2 = vector.load %arg4[%c0_3, %c0_4] : memref<16x16xf32, #tpu.memory_space<vmem>>, vector<16x16xf32>
    %cst = arith.constant 0.000000e+00 : f32
    %3 = vector.broadcast %cst : f32 to vector<1x4x20xf32>
    %c0_5 = arith.constant 0 : index
    %c0_6 = arith.constant 0 : index
    %c0_7 = arith.constant 0 : index
    %4 = vector.load %arg6[%c0_5, %c0_6, %c0_7] : memref<1x4x20xf32, #tpu.memory_space<vmem>>, vector<1x4x20xf32>
    tpu.vector_store %arg6[%c0_5, %c0_6, %c0_7], %3 {strides = array<i32>} : memref<1x4x20xf32, #tpu.memory_space<vmem>>, vector<1x4x20xf32>,
    %c0_8 = arith.constant 0 : index
    %c0_9 = arith.constant 0 : index
    %c0_10 = arith.constant 0 : index
    %5 = vector.load %arg1[%c0_8, %c0_9, %c0_10] : memref<1x4x16xf32, #tpu.memory_space<vmem>>, vector<1x4x16xf32>
    %c0_11 = arith.constant 0 : index
    %c0_12 = arith.constant 0 : index
    %c2 = arith.constant 2 : index
    %6 = vector.load %arg6[%c0_11, %c0_12, %c2] : memref<1x4x20xf32, #tpu.memory_space<vmem>>, vector<1x4x16xf32>
    tpu.vector_store %arg6[%c0_11, %c0_12, %c2], %5 {strides = array<i32>} : memref<1x4x20xf32, #tpu.memory_space<vmem>>, vector<1x4x16xf32>,
    %c0_13 = arith.constant 0 : index
    %c0_14 = arith.constant 0 : index
    %c0_15 = arith.constant 0 : index
    %7 = vector.load %arg6[%c0_13, %c0_14, %c0_15] : memref<1x4x20xf32, #tpu.memory_space<vmem>>, vector<1x4x16xf32>
    %8 = vector.shape_cast %7 : vector<1x4x16xf32> to vector<4x16xf32>
    %c0_16 = arith.constant 0 : index
    %c0_17 = arith.constant 0 : index
    %9 = vector.load %arg7[%c0_16, %c0_17] : memref<20x16xf32, #tpu.memory_space<vmem>>, vector<4x16xf32>
    tpu.vector_store %arg7[%c0_16, %c0_17], %8 {strides = array<i32>} : memref<20x16xf32, #tpu.memory_space<vmem>>, vector<4x16xf32>,
    %c0_18 = arith.constant 0 : index
    %c0_19 = arith.constant 0 : index
    %c1 = arith.constant 1 : index
    %10 = vector.load %arg6[%c0_18, %c0_19, %c1] : memref<1x4x20xf32, #tpu.memory_space<vmem>>, vector<1x4x16xf32>
    %11 = vector.shape_cast %10 : vector<1x4x16xf32> to vector<4x16xf32>
    %c4 = arith.constant 4 : index
    %c0_20 = arith.constant 0 : index
    %12 = vector.load %arg7[%c4, %c0_20] : memref<20x16xf32, #tpu.memory_space<vmem>>, vector<4x16xf32>
    tpu.vector_store %arg7[%c4, %c0_20], %11 {strides = array<i32>} : memref<20x16xf32, #tpu.memory_space<vmem>>, vector<4x16xf32>,
    %c0_21 = arith.constant 0 : index
    %c0_22 = arith.constant 0 : index
    %c2_23 = arith.constant 2 : index
    %13 = vector.load %arg6[%c0_21, %c0_22, %c2_23] : memref<1x4x20xf32, #tpu.memory_space<vmem>>, vector<1x4x16xf32>
    %14 = vector.shape_cast %13 : vector<1x4x16xf32> to vector<4x16xf32>
    %c8 = arith.constant 8 : index
    %c0_24 = arith.constant 0 : index
    %15 = vector.load %arg7[%c8, %c0_24] : memref<20x16xf32, #tpu.memory_space<vmem>>, vector<4x16xf32>
    tpu.vector_store %arg7[%c8, %c0_24], %14 {strides = array<i32>} : memref<20x16xf32, #tpu.memory_space<vmem>>, vector<4x16xf32>,
    %c0_25 = arith.constant 0 : index
    %c0_26 = arith.constant 0 : index
    %c3 = arith.constant 3 : index
    %16 = vector.load %arg6[%c0_25, %c0_26, %c3] : memref<1x4x20xf32, #tpu.memory_space<vmem>>, vector<1x4x16xf32>
    %17 = vector.shape_cast %16 : vector<1x4x16xf32> to vector<4x16xf32>
    %c12 = arith.constant 12 : index
    %c0_27 = arith.constant 0 : index
    %18 = vector.load %arg7[%c12, %c0_27] : memref<20x16xf32, #tpu.memory_space<vmem>>, vector<4x16xf32>
    tpu.vector_store %arg7[%c12, %c0_27], %17 {strides = array<i32>} : memref<20x16xf32, #tpu.memory_space<vmem>>, vector<4x16xf32>,
    %c0_28 = arith.constant 0 : index
    %c0_29 = arith.constant 0 : index
    %c4_30 = arith.constant 4 : index
    %19 = vector.load %arg6[%c0_28, %c0_29, %c4_30] : memref<1x4x20xf32, #tpu.memory_space<vmem>>, vector<1x4x16xf32>
    %20 = vector.shape_cast %19 : vector<1x4x16xf32> to vector<4x16xf32>
    %c16 = arith.constant 16 : index
    %c0_31 = arith.constant 0 : index
    %21 = vector.load %arg7[%c16, %c0_31] : memref<20x16xf32, #tpu.memory_space<vmem>>, vector<4x16xf32>
    tpu.vector_store %arg7[%c16, %c0_31], %20 {strides = array<i32>} : memref<20x16xf32, #tpu.memory_space<vmem>>, vector<4x16xf32>,
    %c0_32 = arith.constant 0 : index
    %c0_33 = arith.constant 0 : index
    %22 = vector.load %arg7[%c0_32, %c0_33] : memref<20x16xf32, #tpu.memory_space<vmem>>, vector<20x16xf32>
    %cst_34 = arith.constant dense<0.000000e+00> : vector<16x16xf32>
    %23 = tpu.matmul %0, %22, %cst_34 {dimension_numbers = #tpu.dot_dimension_numbers<[1], [0], [0], [1], [0, 0, 1, 1], [], []>} : vector<16x20xf32>, vector<20x16xf32>, vector<16x16xf32> -> vector<16x16xf32>
    %24 = vector.broadcast %1 : vector<16x1xf32> to vector<16x16xf32>
    %25 = arith.addf %23, %24 : vector<16x16xf32>
    %cst_35 = arith.constant 0.000000e+00 : f32
    %26 = vector.broadcast %cst_35 : f32 to vector<16x16xf32>
    %27 = arith.cmpf ogt, %25, %26 : vector<16x16xf32>
    %cst_36 = arith.constant 0.00999999977 : f32
    %28 = vector.broadcast %cst_36 : f32 to vector<16x16xf32>
    %29 = arith.mulf %28, %25 : vector<16x16xf32>
    %30 = arith.select %27, %25, %29 : vector<16x16xi1>, vector<16x16xf32>
    %cst_37 = arith.constant dense<0.000000e+00> : vector<16x16xf32>
    %31 = tpu.matmul %2, %30, %cst_37 {dimension_numbers = #tpu.dot_dimension_numbers<[1], [0], [0], [1], [0, 0, 1, 1], [], []>} : vector<16x16xf32>, vector<16x16xf32>, vector<16x16xf32> -> vector<16x16xf32>
    %cst_38 = arith.constant dense<0.000000e+00> : vector<16xf32>
    %32 = vector.multi_reduction <add>, %31, %cst_38 [1] : vector<16x16xf32> to vector<16xf32>
    %33 = vector.shape_cast %32 : vector<16xf32> to vector<16x1xf32>
    %cst_39 = arith.constant 1.600000e+01 : f32
    %34 = vector.broadcast %cst_39 : f32 to vector<16x1xf32>
    %35 = arith.divf %33, %34 : vector<16x1xf32>
    %36 = vector.broadcast %35 : vector<16x1xf32> to vector<16x16xf32>
    %37 = arith.subf %30, %36 : vector<16x16xf32>
    %38 = arith.mulf %37, %37 : vector<16x16xf32>
    %cst_40 = arith.constant dense<0.000000e+00> : vector<16x16xf32>
    %39 = tpu.matmul %2, %38, %cst_40 {dimension_numbers = #tpu.dot_dimension_numbers<[1], [0], [0], [1], [0, 0, 1, 1], [], []>} : vector<16x16xf32>, vector<16x16xf32>, vector<16x16xf32> -> vector<16x16xf32>
    %cst_41 = arith.constant dense<0.000000e+00> : vector<16xf32>
    %40 = vector.multi_reduction <add>, %39, %cst_41 [1] : vector<16x16xf32> to vector<16xf32>
    %41 = vector.shape_cast %40 : vector<16xf32> to vector<16x1xf32>
    %cst_42 = arith.constant 1.600000e+01 : f32
    %42 = vector.broadcast %cst_42 : f32 to vector<16x1xf32>
    %43 = arith.divf %41, %42 : vector<16x1xf32>
    %cst_43 = arith.constant 9.99999997E-7 : f32
    %44 = vector.broadcast %cst_43 : f32 to vector<16x1xf32>
    %45 = arith.addf %43, %44 : vector<16x1xf32>
    %46 = math.rsqrt %45 : vector<16x1xf32>
    %47 = vector.broadcast %46 : vector<16x1xf32> to vector<16x16xf32>
    %48 = arith.mulf %37, %47 : vector<16x16xf32>
    %cst_44 = arith.constant 0.000000e+00 : f32
    %49 = vector.broadcast %cst_44 : f32 to vector<16x16xf32>
    %50 = arith.cmpf ogt, %48, %49 : vector<16x16xf32>
    %cst_45 = arith.constant 0.00999999977 : f32
    %51 = vector.broadcast %cst_45 : f32 to vector<16x16xf32>
    %52 = arith.mulf %51, %48 : vector<16x16xf32>
    %53 = arith.select %50, %48, %52 : vector<16x16xi1>, vector<16x16xf32>
    %54 = vector.extract_strided_slice %53 {offsets = [0, 0], sizes = [8, 16], strides = [1, 1]} : vector<16x16xf32> to vector<8x16xf32>
    %55 = vector.extract_strided_slice %53 {offsets = [8, 0], sizes = [8, 16], strides = [1, 1]} : vector<16x16xf32> to vector<8x16xf32>
    %cst_46 = arith.constant 0.000000e+00 : f32
    %56 = vector.broadcast %cst_46 : f32 to vector<8x16xf32>
    %57 = arith.subf %56, %55 : vector<8x16xf32>
    %58 = math.exp %57 : vector<8x16xf32>
    %cst_47 = arith.constant 1.000000e+00 : f32
    %59 = vector.broadcast %cst_47 : f32 to vector<8x16xf32>
    %60 = arith.addf %59, %58 : vector<8x16xf32>
    %cst_48 = arith.constant 1.000000e+00 : f32
    %61 = vector.broadcast %cst_48 : f32 to vector<8x16xf32>
    %62 = arith.divf %61, %60 : vector<8x16xf32>
    %63 = arith.mulf %54, %62 : vector<8x16xf32>
    %c0_49 = arith.constant 0 : index
    %c0_50 = arith.constant 0 : index
    %c0_51 = arith.constant 0 : index
    %64 = vector.load %arg5[%c0_49, %c0_50, %c0_51] : memref<1x8x16xf32, #tpu.memory_space<vmem>>, vector<1x8x16xf32>
    %65 = vector.shape_cast %64 : vector<1x8x16xf32> to vector<8x16xf32>
    %66 = vector.shape_cast %63 : vector<8x16xf32> to vector<1x8x16xf32>
    tpu.vector_store %arg5[%c0_49, %c0_50, %c0_51], %66 {strides = array<i32>} : memref<1x8x16xf32, #tpu.memory_space<vmem>>, vector<1x8x16xf32>,
    return
  }
  func.func @transform_0(%arg0: i32) -> (i32, i32, i32) {
    %c0_i32 = arith.constant 0 : i32
    %c0_i32_0 = arith.constant 0 : i32
    %c0_i32_1 = arith.constant 0 : i32
    return %arg0, %c0_i32, %c0_i32_0 : i32, i32, i32
  }
  func.func @transform_1(%arg0: i32) -> (i32, i32) {
    %c0_i32 = arith.constant 0 : i32
    %c0_i32_0 = arith.constant 0 : i32
    %c0_i32_1 = arith.constant 0 : i32
    return %c0_i32, %c0_i32_0 : i32, i32
  }
  func.func @transform_2(%arg0: i32) -> (i32, i32) {
    %c0_i32 = arith.constant 0 : i32
    %c0_i32_0 = arith.constant 0 : i32
    %c0_i32_1 = arith.constant 0 : i32
    return %c0_i32, %c0_i32_0 : i32, i32
  }
  func.func @transform_3(%arg0: i32) -> (i32, i32) {
    %c0_i32 = arith.constant 0 : i32
    %c0_i32_0 = arith.constant 0 : i32
    %c0_i32_1 = arith.constant 0 : i32
    return %c0_i32, %c0_i32_0 : i32, i32
  }
  func.func @transform_4(%arg0: i32) -> (i32, i32, i32) {
    %c0_i32 = arith.constant 0 : i32
    %c0_i32_0 = arith.constant 0 : i32
    %c0_i32_1 = arith.constant 0 : i32
    return %arg0, %c0_i32, %c0_i32_0 : i32, i32, i32
  }
}

</mosaic_0001>

<llo_original>
// kernel: tpu_custom_call.1
$region0: #{tpu_custom_call.1}
  #allocation0 [shape = 'u32[]', space=smem, size = 0x4, offset = 0x4, fixed_abs, tag = 'smem constant byte address 0x4 - core index']
  #allocation1 [shape = 'u32[144,128]{1,0:T(1,128)}', space=vmem, size = 0x12000, scoped, tag = 'internal scratch']
  #allocation2 [shape = 'f32[1,4,20]{2,1,0:T(4,128)}', space=vmem, size = 0x800, scoped, tag = 'scratch operand']
  #allocation3 [shape = 'f32[20,16]{1,0:T(8,128)}', space=vmem, size = 0x3000, scoped, tag = 'scratch operand']
  %s0 = inlined_call_operand.hbm [shape: f32[2,4,16], index: 0, kind: input, shape index: {}]
  %s1 = inlined_call_operand.vmem [shape: f32[16,20], index: 1, kind: input, shape index: {}]
  %s2 = inlined_call_operand.vmem [shape: f32[16,1], index: 2, kind: input, shape index: {}]
  %s3 = inlined_call_operand.hbm [shape: f32[16,16], index: 3, kind: input, shape index: {}]
  %s4 = inlined_call_operand.hbm [shape: f32[2,8,16], index: 4, kind: output, shape index: {}]
  %s5 = sld [smem:[#allocation0]]
  $region57: #{tpu_custom_call.1} parent=0
    _
  %s7 = ssub.s32 1, %s5
  %s8 = scalar_select 0, %s7, %s5
  $region1: #{tpu_custom_call.1} parent=0
    #allocation4 [shape = 'u8[4096]{0}', space=vmem, size = 0x1000, scoped, tag = 'input window, operand 0']
    #allocation5 [shape = 's32[2]{0}', space=sflag, size = 0x8, scoped, tag = 'scoped memory for tpu_custom_call.1']
    #allocation6 [shape = 's32[2]{0}', space=sflag, size = 0x8, scoped, tag = 'scoped memory for tpu_custom_call.1']
    #allocation7 [shape = 'u8[8192]{0}', space=vmem, size = 0x2000, scoped, tag = 'input window, operand 3, single buffered']
    #allocation8 [shape = 's32[1]{0}', space=sflag, size = 0x4, scoped, tag = 'scoped memory for tpu_custom_call.1']
    #allocation9 [shape = 'u8[8192]{0}', space=vmem, size = 0x2000, scoped, tag = 'output window, operand 0']
    %9 = vsyncpa [#allocation5], 0
    %s10 = scalar_lea.sflag [#allocation5], 1
    %11 = vsyncpa %s10, 0
    %12 = vsyncpa [#allocation8], 0
    %13 = vsyncpa [#allocation6], 0
    %s14 = scalar_lea.sflag [#allocation6], 1
    %15 = vsyncpa %s14, 0
    loop: start=0, step=1, limit=4
    $region2: #{tpu_custom_call.1} parent=1 // loop_pre_header
      _
    $region3: #{tpu_custom_call.1} parent=1 // loop_header
      %s17 = sphi 0, %s21
      %p18 = scmp.ge.s32.totalorder %s17, 4
      %s27 = sphi 0, %s29
      %s30 = sphi 0, %s27
      %s31 = sphi 0, %s30
      %s47 = sphi 0, %s31
      %s51 = sphi 0, %s51
      %s53 = sphi 0, %s51
      %s54 = sphi 0, %s53
      %s68 = sphi 0, %s54
      %s72 = sphi 0, %s72
      %s74 = sphi 0, %s72
      %s75 = sphi 0, %s74
      %s89 = sphi 0, %s75
      %s93 = sphi 0, %s93
      %s95 = sphi 0, %s93
      %s96 = sphi 0, %s95
      %s110 = sphi 0, %s96
      %s116 = sphi 0, %s118
      %s119 = sphi 0, %s116
      %s120 = sphi 0, %s119
      %s136 = sphi 0, %s120
    $region4: #{tpu_custom_call.1} parent=1 // loop_header_branch
      %20 = sbr.rel (%p18) target = $region8
    $region5: #{tpu_custom_call.1} parent=1 // loop_body
      %s22 = ssub.s32 %s17, 1
      %s23 = ssub.s32 %s17, 2
      %s24 = sadd.s32 %s17, 1
      %s25 = ssub.s32 %s17, %s24
      %p26 = scmp.eq.s32.totalorder %s25, 0
      %s28 = sadd.s32 %s27, 1
      %s29 = scalar_select %p26, %s27, %s28
      %p32 = pneg %p26
      %p33 = scmp.eq.s32.totalorder %s17, 1
      %p34 = por %p32, %p33
      %p35 = scmp.ne.s32.totalorder %s27, %s30
      %p36 = scmp.eq.s32.totalorder %s17, 0
      %p37 = por %p35, %p36
      %p38 = scmp.ne.s32.totalorder %s27, %s30
      %p39 = scmp.eq.s32.totalorder %s22, 1
      %p40 = por %p38, %p39
      %p41 = scmp.ne.s32.totalorder %s30, %s31
      %p42 = scmp.eq.s32.totalorder %s22, 0
      %p43 = por %p41, %p42
      %p44 = scmp.ne.s32.totalorder %s30, %s31
      %p45 = scmp.eq.s32.totalorder %s23, 1
      %p46 = por %p44, %p45
      %p48 = scmp.ne.s32.totalorder %s31, %s47
      %p49 = scmp.eq.s32.totalorder %s23, 0
      %p50 = por %p48, %p49
      %s52 = sadd.s32 %s51, 1
      %p55 = scmp.eq.s32.totalorder %s17, 1
      %p56 = scmp.ne.s32.totalorder %s51, %s53
      %p57 = scmp.eq.s32.totalorder %s17, 0
      %p58 = por %p56, %p57
      %p59 = scmp.ne.s32.totalorder %s51, %s53
      %p60 = scmp.eq.s32.totalorder %s22, 1
      %p61 = por %p59, %p60
      %p62 = scmp.ne.s32.totalorder %s53, %s54
      %p63 = scmp.eq.s32.totalorder %s22, 0
      %p64 = por %p62, %p63
      %p65 = scmp.ne.s32.totalorder %s53, %s54
      %p66 = scmp.eq.s32.totalorder %s23, 1
      %p67 = por %p65, %p66
      %p69 = scmp.ne.s32.totalorder %s54, %s68
      %p70 = scmp.eq.s32.totalorder %s23, 0
      %p71 = por %p69, %p70
      %s73 = sadd.s32 %s72, 1
      %p76 = scmp.eq.s32.totalorder %s17, 1
      %p77 = scmp.ne.s32.totalorder %s72, %s74
      %p78 = scmp.eq.s32.totalorder %s17, 0
      %p79 = por %p77, %p78
      %p80 = scmp.ne.s32.totalorder %s72, %s74
      %p81 = scmp.eq.s32.totalorder %s22, 1
      %p82 = por %p80, %p81
      %p83 = scmp.ne.s32.totalorder %s74, %s75
      %p84 = scmp.eq.s32.totalorder %s22, 0
      %p85 = por %p83, %p84
      %p86 = scmp.ne.s32.totalorder %s74, %s75
      %p87 = scmp.eq.s32.totalorder %s23, 1
      %p88 = por %p86, %p87
      %p90 = scmp.ne.s32.totalorder %s75, %s89
      %p91 = scmp.eq.s32.totalorder %s23, 0
      %p92 = por %p90, %p91
      %s94 = sadd.s32 %s93, 1
      %p97 = scmp.eq.s32.totalorder %s17, 1
      %p98 = scmp.ne.s32.totalorder %s93, %s95
      %p99 = scmp.eq.s32.totalorder %s17, 0
      %p100 = por %p98, %p99
      %p101 = scmp.ne.s32.totalorder %s93, %s95
      %p102 = scmp.eq.s32.totalorder %s22, 1
      %p103 = por %p101, %p102
      %p104 = scmp.ne.s32.totalorder %s95, %s96
      %p105 = scmp.eq.s32.totalorder %s22, 0
      %p106 = por %p104, %p105
      %p107 = scmp.ne.s32.totalorder %s95, %s96
      %p108 = scmp.eq.s32.totalorder %s23, 1
      %p109 = por %p107, %p108
      %p111 = scmp.ne.s32.totalorder %s96, %s110
      %p112 = scmp.eq.s32.totalorder %s23, 0
      %p113 = por %p111, %p112
      %s114 = ssub.s32 %s17, %s24
      %p115 = scmp.eq.s32.totalorder %s114, 0
      %s117 = sadd.s32 %s116, 1
      %s118 = scalar_select %p115, %s116, %s117
      %p121 = pneg %p115
      %p122 = scmp.eq.s32.totalorder %s17, 1
      %p123 = por %p121, %p122
      %p124 = scmp.ne.s32.totalorder %s116, %s119
      %p125 = scmp.eq.s32.totalorder %s17, 0
      %p126 = por %p124, %p125
      %p127 = scmp.ne.s32.totalorder %s116, %s119
      %p128 = scmp.eq.s32.totalorder %s22, 1
      %p129 = por %p127, %p128
      %p130 = scmp.ne.s32.totalorder %s119, %s120
      %p131 = scmp.eq.s32.totalorder %s22, 0
      %p132 = por %p130, %p131
      %p133 = scmp.ne.s32.totalorder %s119, %s120
      %p134 = scmp.eq.s32.totalorder %s23, 1
      %p135 = por %p133, %p134
      %p137 = scmp.ne.s32.totalorder %s120, %s136
      %p138 = scmp.eq.s32.totalorder %s23, 0
      %p139 = por %p137, %p138
      %p140 = scmp.le.s32.totalorder 1, %s17
      %p141 = scmp.lt.s32.totalorder %s17, 3
      %p142 = pnand %p140, %p141
      %p143 = pneg %p142
      // Predicated region
      $region9: #{tpu_custom_call.1} parent=5 // pred_check
        _
      $region10: #{tpu_custom_call.1} parent=5 // pred_check_branch
        %145 = sbr.rel (%p142) target = $region12
      $region11: #{tpu_custom_call.1} parent=5 // pred_region
        %s146 = ssub.s32 %s17, 1
        // Predicated region
        $region13: #{tpu_custom_call.1} parent=11 // pred_check
          %p147 = pneg %p64
        $region14: #{tpu_custom_call.1} parent=11 // pred_check_branch
          %149 = sbr.rel (%p147) target = $region16
        $region15: #{tpu_custom_call.1} parent=11 // pred_region
          _
        $region16: #{tpu_custom_call.1} parent=11 // pred_fallthru
          _
        // Predicated region
        $region17: #{tpu_custom_call.1} parent=11 // pred_check
          %p150 = pneg %p85
        $region18: #{tpu_custom_call.1} parent=11 // pred_check_branch
          %152 = sbr.rel (%p150) target = $region20
        $region19: #{tpu_custom_call.1} parent=11 // pred_region
          _
        $region20: #{tpu_custom_call.1} parent=11 // pred_fallthru
          _
        // Predicated region
        $region21: #{tpu_custom_call.1} parent=11 // pred_check
          %p153 = pneg %p106
        $region22: #{tpu_custom_call.1} parent=11 // pred_check_branch
          %155 = sbr.rel (%p153) target = $region24
        $region23: #{tpu_custom_call.1} parent=11 // pred_region
          %s157 = ssub.s32 256, 256
          %158 = vsyncadd [#allocation8], %s157
          %s159 = sshll.u32 [#allocation7], 4
          %s160 = int_to_ptr.vmem [resolvable:$true] %s159
          %165 = dma.hbm_to_vmem [thread:$0]  %s3, 256, %s160, [#allocation8], 128, 128, 8
        $region24: #{tpu_custom_call.1} parent=11 // pred_fallthru
          _
      $region12: #{tpu_custom_call.1} parent=5 // pred_fallthru
        _
      %p166 = scmp.lt.s32.totalorder %s17, 2
      // Predicated region
      $region25: #{tpu_custom_call.1} parent=5 // pred_check
        %p167 = pneg %p166
      $region26: #{tpu_custom_call.1} parent=5 // pred_check_branch
        %169 = sbr.rel (%p167) target = $region28
      $region27: #{tpu_custom_call.1} parent=5 // pred_region
        // Predicated region
        $region29: #{tpu_custom_call.1} parent=27 // pred_check
          %p170 = pneg %p37
        $region30: #{tpu_custom_call.1} parent=27 // pred_check_branch
          %172 = sbr.rel (%p170) target = $region32
        $region31: #{tpu_custom_call.1} parent=27 // pred_region
          %s173 = sand.u32 %s27, 1
          %s174 = scalar_lea.sflag [#allocation5], %s173
          %s175 = sand.u32 %s27, 1
          %s176 = smul.addr %s175, 4
          %s177 = scalar_lea.vmem [#allocation4], %s176
          %s179 = ssub.s32 64, 64
          %180 = vsyncadd %s174, %s179
          %s181 = smul.addr %s17, 64
          %s182 = scalar_lea.hbm %s0, %s181
          %s184 = sshll.u32 %s177, 4
          %s185 = int_to_ptr.vmem [resolvable:$true] %s184
          %187 = dma.hbm_to_vmem [thread:$0]  %s182, 64, %s185, %s174
        $region32: #{tpu_custom_call.1} parent=27 // pred_fallthru
          _
      $region28: #{tpu_custom_call.1} parent=5 // pred_fallthru
        _
      %p188 = scmp.le.s32.totalorder 1, %s17
      %p189 = scmp.lt.s32.totalorder %s17, 3
      %p190 = pnand %p188, %p189
      %p191 = pneg %p190
      // Predicated region
      $region33: #{tpu_custom_call.1} parent=5 // pred_check
        _
      $region34: #{tpu_custom_call.1} parent=5 // pred_check_branch
        %193 = sbr.rel (%p190) target = $region36
      $region35: #{tpu_custom_call.1} parent=5 // pred_region
        %s194 = ssub.s32 %s17, 1
        %s195 = sand.u32 %s30, 1
        %s196 = scalar_lea.sflag [#allocation5], %s195
        %s197 = sand.u32 %s30, 1
        %s198 = smul.addr %s197, 4
        %s199 = scalar_lea.vmem [#allocation4], %s198
        // Predicated region
        $region37: #{tpu_custom_call.1} parent=35 // pred_check
          %p200 = pneg %p43
        $region38: #{tpu_custom_call.1} parent=35 // pred_check_branch
          %202 = sbr.rel (%p200) target = $region40
        $region39: #{tpu_custom_call.1} parent=35 // pred_region
          %203 = dma.done %s196, 64
        $region40: #{tpu_custom_call.1} parent=35 // pred_fallthru
          _
        // Predicated region
        $region41: #{tpu_custom_call.1} parent=35 // pred_check
          %p204 = pneg %p106
        $region42: #{tpu_custom_call.1} parent=35 // pred_check_branch
          %206 = sbr.rel (%p204) target = $region44
        $region43: #{tpu_custom_call.1} parent=35 // pred_region
          %207 = dma.done [#allocation8], 256
        $region44: #{tpu_custom_call.1} parent=35 // pred_fallthru
          _
        %s208 = sand.u32 %s30, 1
        %s209 = scalar_lea.sflag [#allocation5], %s208
        %s210 = sand.u32 %s30, 1
        %s211 = smul.addr %s210, 4
        %s212 = scalar_lea.vmem [#allocation4], %s211
        %p213 = pneg %p43
        %p214 = pneg %p40
        %p215 = pneg %p64
        %p216 = pneg %p61
        %p217 = pneg %p85
        %p218 = pneg %p82
        %p219 = pneg %p106
        %p220 = pneg %p103
        %p221 = pneg %p132
        %p222 = pneg %p129
        %s223 = sand.u32 %s119, 1
        %s224 = scalar_lea.sflag [#allocation6], %s223
        %s225 = sand.u32 %s119, 1
        %s226 = smul.addr %s225, 8
        %s227 = scalar_lea.vmem [#allocation9], %s226
        %v228 = vld [vmem:[%s1] sm:$0xff]
        %v229 = vld [vmem:[%s1 + $0x8] sm:$0xff]
        %v230 = vld [vmem:[%s2] sm:$0xff]
        %v231 = vld [vmem:[%s2 + $0x8] sm:$0xff]
        %v232 = vld [vmem:[#allocation7] sm:$0xff]
        %v233 = vld [vmem:[#allocation7 + $0x8] sm:$0xff]
        %vm234 = vcmask 158720
        %235 = vst.msk [vmem:[#allocation2] sm:$0xf] %vm234, 0.0
        %v236 = vld [vmem:[%s199] sm:$0xf]
        %238 = vrot.lane.b32.xlu0 %v236, 2
        %v239 = vpop.permute.xlu0 %238
        %vm241 = vcmask 142352
        %242 = vst.msk [vmem:[#allocation2] sm:$0xf] %vm241, %v239
        %v243 = vld [vmem:[#allocation2] sm:$0xf]
        %vm244 = vcmask 125952
        %245 = vst.msk [vmem:[#allocation3] sm:$0xf] %vm244, %v243
        %v246 = vld [vmem:[#allocation2] sm:$0xf]
        %248 = vrot.lane.b32.xlu0 %v246, 127
        %v249 = vpop.permute.xlu0 %248
        %251 = vst.msk [vmem:[#allocation3 + $0x4] sm:$0xf] %vm244, %v249
        %v252 = vld [vmem:[#allocation2] sm:$0xf]
        %254 = vrot.lane.b32.xlu0 %v252, 126
        %v255 = vpop.permute.xlu0 %254
        %257 = vst.msk [vmem:[#allocation3 + $0x8] sm:$0xf] %vm244, %v255
        %v258 = vld [vmem:[#allocation2] sm:$0xf]
        %260 = vrot.lane.b32.xlu0 %v258, 125
        %v261 = vpop.permute.xlu0 %260
        %263 = vst.msk [vmem:[#allocation3 + $0xc] sm:$0xf] %vm244, %v261
        %v264 = vld [vmem:[#allocation2] sm:$0xf]
        %266 = vrot.lane.b32.xlu0 %v264, 124
        %v267 = vpop.permute.xlu0 %266
        %269 = vst.msk [vmem:[#allocation3 + $0x10] sm:$0xf] %vm244, %v267
        %v270 = vld [vmem:[#allocation3] sm:$0xff]
        %v271 = vld [vmem:[#allocation3 + $0x8] sm:$0xff]
        %v272 = vld [vmem:[#allocation3 + $0x10] sm:$0xf]
        %274 = vset.pattern.permute.xlu0 0
        %275 = vperm.xlu0 %274, %v230
        %v276 = vpop.permute.xlu0 %275
        %279 = vset.pattern.permute.xlu0 0
        %280 = vperm.xlu0 %279, %v231
        %v281 = vpop.permute.xlu0 %280
        %vm283 = vcmask 162816
        %v285 = vsel %vm283, %v228, 0
        %v288 = vsel %vm283, %v229, 0
        %vm290 = vcmask 1043456
        %v292 = vsel %vm290, %v272, 0
        %294 = vmatprep.subr.mxu0 0.0
        %295 = vmatpush1.msra.mxu0 %v270
        %296 = vmatprep.subr.mxu0 0.0
        %297 = vmatpush1.msra.mxu0 %v271
        %298 = vmatprep.subr.mxu0 0.0
        %299 = vmatpush1.msra.mxu0 %v292
        %300 = vmatprep.subr.mxu0 0.0
        %301 = vmatpush1.msra.mxu0 0.0
        %302 = vmatprep.subr.mxu0 0.0
        %303 = vmatpush1.msra.mxu0 0.0
        %304 = vmatprep.subr.mxu0 0.0
        %305 = vmatpush1.msra.mxu0 0.0
        %306 = vmatprep.subr.mxu0 0.0
        %307 = vmatpush1.msra.mxu0 0.0
        %308 = vmatprep.subr.mxu0 0.0
        %309 = vmatpush1.msra.mxu0 0.0
        %310 = vmatprep.subr.mxu0 0.0
        %311 = vmatpush1.msra.mxu0 0.0
        %312 = vmatprep.subr.mxu0 0.0
        %313 = vmatpush1.msra.mxu0 0.0
        %314 = vmatprep.subr.mxu0 0.0
        %315 = vmatpush1.msra.mxu0 0.0
        %316 = vmatprep.subr.mxu0 0.0
        %317 = vmatpush1.msra.mxu0 0.0
        %318 = vmatprep.subr.mxu0 0.0
        %319 = vmatpush1.msra.mxu0 0.0
        %320 = vmatprep.subr.mxu0 0.0
        %321 = vmatpush1.msra.mxu0 0.0
        %322 = vmatprep.subr.mxu0 0.0
        %323 = vmatpush1.msra.mxu0 0.0
        %324 = vmatprep.subr.mxu0 0.0
        %325 = vmatpush1.msra.mxu0 0.0
        %326 = vmatprep.subr.mxu0 0.0
        %327 = vmatpush1.msra.mxu0 0.0
        %328 = vmatprep.subr.mxu0 0.0
        %329 = vmatpush1.msra.mxu0 0.0
        %330 = vmatprep.subr.mxu0 0.0
        %331 = vmatpush1.msra.mxu0 0.0
        %332 = vmatprep.subr.mxu0 0.0
        %333 = vmatpush1.msra.mxu0 0.0
        %334 = vmatprep.subr.mxu0 0.0
        %335 = vmatpush1.msra.mxu0 0.0
        %336 = vmatprep.subr.mxu0 0.0
        %337 = vmatpush1.msra.mxu0 0.0
        %338 = vmatprep.subr.mxu0 0.0
        %339 = vmatpush1.msra.mxu0 0.0
        %340 = vmatprep.subr.mxu0 0.0
        %341 = vmatpush1.msra.mxu0 0.0
        %342 = vmatprep.subr.mxu0 0.0
        %343 = vmatpush1.msra.mxu0 0.0
        %344 = vmatprep.subr.mxu0 0.0
        %345 = vmatpush1.msra.mxu0 0.0
        %346 = vmatprep.subr.mxu0 0.0
        %347 = vmatpush1.msra.mxu0 0.0
        %348 = vmatprep.subr.mxu0 0.0
        %349 = vmatpush1.msra.mxu0 0.0
        %350 = vmatprep.subr.mxu0 0.0
        %351 = vmatpush1.msra.mxu0 0.0
        %352 = vmatprep.subr.mxu0 0.0
        %353 = vmatpush1.msra.mxu0 0.0
        %354 = vmatprep.subr.mxu0 0.0
        %355 = vmatpush1.msra.mxu0 0.0
        %356 = vmatprep.subr.mxu0 0.0
        %357 = vmatpush1.msra.mxu0 0.0
        %358 = vmatprep.mubr.f32.mxu0 0.0
        %359 = vmatmul.mubr.f32.gmra.mrb[0].mxu0 %v285
        %v360 = vpop.f32.mrb[0].mxu0
        %v361 = vadd.f32 %v276, %v360
        %v362 = vpop.f32.mrb[0].mxu0
        %363 = vmatprep.mubr.f32.mxu0 0.0
        %364 = vmatmul.mubr.f32.gmra.mrb[0].mxu0 %v288
        %v365 = vpop.f32.mrb[0].mxu0
        %v366 = vadd.f32 %v281, %v365
        %v367 = vpop.f32.mrb[0].mxu0
        %368 = vdwg.mxu0
        %vm369 = vcmp.gt.f32.partialorder %v361, 0.0
        %vm370 = vcmp.gt.f32.partialorder %v366, 0.0
        %v371 = vmul.f32 %v361, 0.01
        %v372 = vmul.f32 %v366, 0.01
        %v373 = vsel %vm369, %v361, %v371
        %v374 = vsel %vm370, %v366, %v372
        %vm375 = vcmask 130048
        %v377 = vsel %vm375, %v232, 0
        %v380 = vsel %vm375, %v233, 0
        %382 = vmatprep.subr.mxu0 0.0
        %383 = vmatpush1.msra.mxu0 %v373
        %384 = vmatprep.subr.mxu0 0.0
        %385 = vmatpush1.msra.mxu0 %v374
        %386 = vmatprep.subr.mxu0 0.0
        %387 = vmatpush1.msra.mxu0 0.0
        %388 = vmatprep.subr.mxu0 0.0
        %389 = vmatpush1.msra.mxu0 0.0
        %390 = vmatprep.subr.mxu0 0.0
        %391 = vmatpush1.msra.mxu0 0.0
        %392 = vmatprep.subr.mxu0 0.0
        %393 = vmatpush1.msra.mxu0 0.0
        %394 = vmatprep.subr.mxu0 0.0
        %395 = vmatpush1.msra.mxu0 0.0
        %396 = vmatprep.subr.mxu0 0.0
        %397 = vmatpush1.msra.mxu0 0.0
        %398 = vmatprep.subr.mxu0 0.0
        %399 = vmatpush1.msra.mxu0 0.0
        %400 = vmatprep.subr.mxu0 0.0
        %401 = vmatpush1.msra.mxu0 0.0
        %402 = vmatprep.subr.mxu0 0.0
        %403 = vmatpush1.msra.mxu0 0.0
        %404 = vmatprep.subr.mxu0 0.0
        %405 = vmatpush1.msra.mxu0 0.0
        %406 = vmatprep.subr.mxu0 0.0
        %407 = vmatpush1.msra.mxu0 0.0
        %408 = vmatprep.subr.mxu0 0.0
        %409 = vmatpush1.msra.mxu0 0.0
        %410 = vmatprep.subr.mxu0 0.0
        %411 = vmatpush1.msra.mxu0 0.0
        %412 = vmatprep.subr.mxu0 0.0
        %413 = vmatpush1.msra.mxu0 0.0
        %414 = vmatprep.subr.mxu0 0.0
        %415 = vmatpush1.msra.mxu0 0.0
        %416 = vmatprep.subr.mxu0 0.0
        %417 = vmatpush1.msra.mxu0 0.0
        %418 = vmatprep.subr.mxu0 0.0
        %419 = vmatpush1.msra.mxu0 0.0
        %420 = vmatprep.subr.mxu0 0.0
        %421 = vmatpush1.msra.mxu0 0.0
        %422 = vmatprep.subr.mxu0 0.0
        %423 = vmatpush1.msra.mxu0 0.0
        %424 = vmatprep.subr.mxu0 0.0
        %425 = vmatpush1.msra.mxu0 0.0
        %426 = vmatprep.subr.mxu0 0.0
        %427 = vmatpush1.msra.mxu0 0.0
        %428 = vmatprep.subr.mxu0 0.0
        %429 = vmatpush1.msra.mxu0 0.0
        %430 = vmatprep.subr.mxu0 0.0
        %431 = vmatpush1.msra.mxu0 0.0
        %432 = vmatprep.subr.mxu0 0.0
        %433 = vmatpush1.msra.mxu0 0.0
        %434 = vmatprep.subr.mxu0 0.0
        %435 = vmatpush1.msra.mxu0 0.0
        %436 = vmatprep.subr.mxu0 0.0
        %437 = vmatpush1.msra.mxu0 0.0
        %438 = vmatprep.subr.mxu0 0.0
        %439 = vmatpush1.msra.mxu0 0.0
        %440 = vmatprep.subr.mxu0 0.0
        %441 = vmatpush1.msra.mxu0 0.0
        %442 = vmatprep.subr.mxu0 0.0
        %443 = vmatpush1.msra.mxu0 0.0
        %444 = vmatprep.subr.mxu0 0.0
        %445 = vmatpush1.msra.mxu0 0.0
        %446 = vmatprep.mubr.f32.mxu0 0.0
        %447 = vmatmul.mubr.f32.gmra.mrb[0].mxu0 %v377
        %v448 = vpop.f32.mrb[0].mxu0
        %v449 = vadd.f32 0.0, %v448
        %v450 = vpop.f32.mrb[0].mxu0
        %451 = vmatprep.mubr.f32.mxu0 0.0
        %452 = vmatmul.mubr.f32.gmra.mrb[0].mxu0 %v380
        %v453 = vpop.f32.mrb[0].mxu0
        %v454 = vadd.f32 0.0, %v453
        %v455 = vpop.f32.mrb[0].mxu0
        %456 = vdwg.mxu0
        %v457 = vsel %vm375, %v449, 0.0
        %458 = vadd.xlane.f32.xlu0 %v457
        %v459 = vpop.xlane.xlu0 %458
        %v460 = vsel %vm375, %v454, 0.0
        %461 = vadd.xlane.f32.xlu0 %v460
        %v462 = vpop.xlane.xlu0 %461
        %v463 = vrcp.pop 16.0
        %v464 = vmul.f32 %v459, %v463
        %v465 = vmul.f32 %v462, %v463
        %v466 = vsub.f32 %v373, %v464
        %v467 = vsub.f32 %v374, %v465
        %v468 = vmul.f32 %v466, %v466
        %v469 = vmul.f32 %v467, %v467
        %470 = vmatprep.subr.mxu0 0.0
        %471 = vmatpush1.msra.mxu0 %v468
        %472 = vmatprep.subr.mxu0 0.0
        %473 = vmatpush1.msra.mxu0 %v469
        %474 = vmatprep.subr.mxu0 0.0
        %475 = vmatpush1.msra.mxu0 0.0
        %476 = vmatprep.subr.mxu0 0.0
        %477 = vmatpush1.msra.mxu0 0.0
        %478 = vmatprep.subr.mxu0 0.0
        %479 = vmatpush1.msra.mxu0 0.0
        %480 = vmatprep.subr.mxu0 0.0
        %481 = vmatpush1.msra.mxu0 0.0
        %482 = vmatprep.subr.mxu0 0.0
        %483 = vmatpush1.msra.mxu0 0.0
        %484 = vmatprep.subr.mxu0 0.0
        %485 = vmatpush1.msra.mxu0 0.0
        %486 = vmatprep.subr.mxu0 0.0
        %487 = vmatpush1.msra.mxu0 0.0
        %488 = vmatprep.subr.mxu0 0.0
        %489 = vmatpush1.msra.mxu0 0.0
        %490 = vmatprep.subr.mxu0 0.0
        %491 = vmatpush1.msra.mxu0 0.0
        %492 = vmatprep.subr.mxu0 0.0
        %493 = vmatpush1.msra.mxu0 0.0
        %494 = vmatprep.subr.mxu0 0.0
        %495 = vmatpush1.msra.mxu0 0.0
        %496 = vmatprep.subr.mxu0 0.0
        %497 = vmatpush1.msra.mxu0 0.0
        %498 = vmatprep.subr.mxu0 0.0
        %499 = vmatpush1.msra.mxu0 0.0
        %500 = vmatprep.subr.mxu0 0.0
        %501 = vmatpush1.msra.mxu0 0.0
        %502 = vmatprep.subr.mxu0 0.0
        %503 = vmatpush1.msra.mxu0 0.0
        %504 = vmatprep.subr.mxu0 0.0
        %505 = vmatpush1.msra.mxu0 0.0
        %506 = vmatprep.subr.mxu0 0.0
        %507 = vmatpush1.msra.mxu0 0.0
        %508 = vmatprep.subr.mxu0 0.0
        %509 = vmatpush1.msra.mxu0 0.0
        %510 = vmatprep.subr.mxu0 0.0
        %511 = vmatpush1.msra.mxu0 0.0
        %512 = vmatprep.subr.mxu0 0.0
        %513 = vmatpush1.msra.mxu0 0.0
        %514 = vmatprep.subr.mxu0 0.0
        %515 = vmatpush1.msra.mxu0 0.0
        %516 = vmatprep.subr.mxu0 0.0
        %517 = vmatpush1.msra.mxu0 0.0
        %518 = vmatprep.subr.mxu0 0.0
        %519 = vmatpush1.msra.mxu0 0.0
        %520 = vmatprep.subr.mxu0 0.0
        %521 = vmatpush1.msra.mxu0 0.0
        %522 = vmatprep.subr.mxu0 0.0
        %523 = vmatpush1.msra.mxu0 0.0
        %524 = vmatprep.subr.mxu0 0.0
        %525 = vmatpush1.msra.mxu0 0.0
        %526 = vmatprep.subr.mxu0 0.0
        %527 = vmatpush1.msra.mxu0 0.0
        %528 = vmatprep.subr.mxu0 0.0
        %529 = vmatpush1.msra.mxu0 0.0
        %530 = vmatprep.subr.mxu0 0.0
        %531 = vmatpush1.msra.mxu0 0.0
        %532 = vmatprep.subr.mxu0 0.0
        %533 = vmatpush1.msra.mxu0 0.0
        %534 = vmatprep.mubr.f32.mxu0 0.0
        %535 = vmatmul.mubr.f32.gmra.mrb[0].mxu0 %v377
        %v536 = vpop.f32.mrb[0].mxu0
        %v537 = vadd.f32 0.0, %v536
        %v538 = vpop.f32.mrb[0].mxu0
        %539 = vmatprep.mubr.f32.mxu0 0.0
        %540 = vmatmul.mubr.f32.gmra.mrb[0].mxu0 %v380
        %v541 = vpop.f32.mrb[0].mxu0
        %v542 = vadd.f32 0.0, %v541
        %v543 = vpop.f32.mrb[0].mxu0
        %544 = vdwg.mxu0
        %v545 = vsel %vm375, %v537, 0.0
        %546 = vadd.xlane.f32.xlu0 %v545
        %v547 = vpop.xlane.xlu0 %546
        %v548 = vsel %vm375, %v542, 0.0
        %549 = vadd.xlane.f32.xlu0 %v548
        %v550 = vpop.xlane.xlu0 %549
        %v551 = vmul.f32 %v547, %v463
        %v552 = vmul.f32 %v550, %v463
        %v553 = vadd.f32 %v551, 1e-06
        %v554 = vadd.f32 %v552, 1e-06
        %v555 = vrsqrt.pop %v553
        %v556 = vrsqrt.pop %v554
        %v557 = vmul.f32 %v466, %v555
        %v558 = vmul.f32 %v467, %v556
        %vm559 = vcmp.gt.f32.partialorder %v557, 0.0
        %vm560 = vcmp.gt.f32.partialorder %v558, 0.0
        %v561 = vmul.f32 %v557, 0.01
        %v562 = vmul.f32 %v558, 0.01
        %v563 = vsel %vm559, %v557, %v561
        %v564 = vsel %vm560, %v558, %v562
        %v565 = vsub.f32 0.0, %v564
        %v566 = vmul.f32 %v565, 1.442695
        %v567 = vpow.pop %v566
        %v568 = vadd.f32 %v567, 1.0
        %v569 = vrcp.pop %v568
        %v570 = vmul.f32 1.0, %v569
        %v571 = vmul.f32 %v563, %v570
        %572 = vst.msk [vmem:[%s227] sm:$0xff] %vm375, %v571
        %s573 = sand.u32 %s119, 1
        %s574 = scalar_lea.sflag [#allocation6], %s573
        %s575 = sand.u32 %s119, 1
        %s576 = smul.addr %s575, 8
        %s577 = scalar_lea.vmem [#allocation9], %s576
        // Predicated region
        $region45: #{tpu_custom_call.1} parent=35 // pred_check
          %p578 = pneg %p129
        $region46: #{tpu_custom_call.1} parent=35 // pred_check_branch
          %580 = sbr.rel (%p578) target = $region48
        $region47: #{tpu_custom_call.1} parent=35 // pred_region
          %s582 = ssub.s32 128, 128
          %583 = vsyncadd %s574, %s582
          %s584 = smul.addr %s22, 128
          %s585 = scalar_lea.hbm %s4, %s584
          %s587 = sshll.u32 %s577, 4
          %s588 = int_to_ptr.vmem [resolvable:$true] %s587
          %590 = dma.vmem_to_hbm [thread:$0]  %s588, 128, %s585, %s574
        $region48: #{tpu_custom_call.1} parent=35 // pred_fallthru
          _
      $region36: #{tpu_custom_call.1} parent=5 // pred_fallthru
        _
      %p591 = scmp.le.s32.totalorder 2, %s17
      // Predicated region
      $region49: #{tpu_custom_call.1} parent=5 // pred_check
        %p592 = pneg %p591
      $region50: #{tpu_custom_call.1} parent=5 // pred_check_branch
        %594 = sbr.rel (%p592) target = $region52
      $region51: #{tpu_custom_call.1} parent=5 // pred_region
        %s595 = ssub.s32 %s17, 2
        // Predicated region
        $region53: #{tpu_custom_call.1} parent=51 // pred_check
          %p596 = pneg %p135
        $region54: #{tpu_custom_call.1} parent=51 // pred_check_branch
          %598 = sbr.rel (%p596) target = $region56
        $region55: #{tpu_custom_call.1} parent=51 // pred_region
          %s599 = sand.u32 %s120, 1
          %s600 = scalar_lea.sflag [#allocation6], %s599
          %s601 = sand.u32 %s120, 1
          %s602 = smul.addr %s601, 8
          %s603 = scalar_lea.vmem [#allocation9], %s602
          %604 = dma.done %s600, 128
        $region56: #{tpu_custom_call.1} parent=51 // pred_fallthru
          _
      $region52: #{tpu_custom_call.1} parent=5 // pred_fallthru
        _
    $region6: #{tpu_custom_call.1} parent=1 // loop_footer
      %s21 = sadd.s32 1, %s17
    $region7: #{tpu_custom_call.1} parent=1 // loop_footer_branch
      %16 = sbr.rel target = $region3
    $region8: #{tpu_custom_call.1} parent=1 // loop_exit
      _
    %605 = vsyncpa [#allocation5], 1
    %s606 = scalar_lea.sflag [#allocation5], 1
    %607 = vsyncpa %s606, 1
    %608 = vsyncpa [#allocation8], 1
    %609 = vsyncpa [#allocation6], 1
    %s610 = scalar_lea.sflag [#allocation6], 1
    %611 = vsyncpa %s610, 1

</llo_original>
